<compile_context>
chip_gen: v7x
topology: tpu7x:2x2x1
jax: 0.10.0
libtpu: 0.0.40
codegen_flags: <defaults>
</compile_context>

<pallas_src>
import functools

import jax
import jax.numpy as jnp
from jax.experimental import pallas as pl
from jax.experimental.pallas import tpu as pltpu


def _round_up(x, m):
    return (x + m - 1) // m * m


def _pooled_sum_kernel(x_ref, o_ref, acc_ref, *, num_d1, n_full, rem):
    si = pl.program_id(0)
    di = pl.program_id(2)

    @pl.when(di == 0)
    def _init():
        acc_ref[...] = jnp.zeros_like(acc_ref)

    g_blk = si * num_d1 + di  # global D1-block index

    @pl.when(g_blk < n_full)
    def _full_tile():
        # Sum over the d1 axis only (axis 1): pure VALU adds, no cross-lane work.
        acc_ref[...] += jnp.sum(x_ref[...].astype(jnp.float32), axis=1)

    if rem > 0:
        @pl.when(g_blk == n_full)
        def _ragged_tile():
            # Last real D1 block is partial: only its first `rem` rows are valid
            # (the rest of the edge block is undefined and must not be summed).
            acc_ref[...] += jnp.sum(x_ref[:, :rem].astype(jnp.float32), axis=1)

    # Grid points with g_blk beyond the true D1 extent are pure padding from
    # the split axis and are skipped entirely (neither branch fires).

    @pl.when(di == num_d1 - 1)
    def _finalize():
        # Single cross-lane reduction over D3, once per (split, batch-block).
        o_ref[...] = jnp.sum(acc_ref[...], axis=-1)


def my_channel_attention(x, w1, b1, w2, b2):
    """x: (B, D1, C, D3); w1: (C, 4); b1: (4,); w2: (4, C); b2: (C,)."""
    B, D1, C, D3 = x.shape
    itemsize = jnp.dtype(x.dtype).itemsize

    # --- tile sizing --------------------------------------------------------
    # VMEM footprint of one (b, d1) row, accounting for (sublane, lane) tile
    # padding of the trailing (C, D3) dims.
    row_vmem = _round_up(C, 32) * _round_up(D3, 128) * itemsize
    budget = 12 * 1024 * 1024  # per x block; 2 buffers + scratch stay < ~48 MiB

    b_blk = max(1, min(B, 8, budget // row_vmem))
    d1_blk = max(1, min(D1, budget // max(1, b_blk * row_vmem)))
    n_blocks_true = pl.cdiv(D1, d1_blk)
    num_b = pl.cdiv(B, b_blk)

    # v7x megacore: guarantee >= 2 blocks on a parallel axis. If the batch axis
    # gives only one block, split the D1 range across a leading parallel axis
    # (each split owns its own accumulator / output row; wrapper sums them).
    if num_b == 1 and n_blocks_true == 1 and D1 >= 2:
        d1_blk = pl.cdiv(D1, 2)
        n_blocks_true = pl.cdiv(D1, d1_blk)
    num_s = 2 if (num_b == 1 and n_blocks_true >= 2) else 1
    num_d1 = pl.cdiv(n_blocks_true, num_s)

    n_full = D1 // d1_blk          # number of complete D1 blocks
    rem = D1 - n_full * d1_blk     # rows in the ragged tail block (0 if none)

    if num_s * num_d1 > n_blocks_true:
        # Some (split, d1) grid points are pure padding; clamp their block
        # index so the DMA stays in bounds (the kernel skips their data).
        def x_index_map(si, bi, di):
            return (bi, jnp.minimum(si * num_d1 + di, n_blocks_true - 1), 0, 0)
    else:
        def x_index_map(si, bi, di):
            return (bi, si * num_d1 + di, 0, 0)

    block_vmem = b_blk * d1_blk * row_vmem
    acc_vmem = b_blk * _round_up(C, 8) * _round_up(D3, 128) * 4
    vmem_limit = int(max(48 << 20, 2 * block_vmem + acc_vmem + (4 << 20)))

    kernel = functools.partial(_pooled_sum_kernel,
                               num_d1=num_d1, n_full=n_full, rem=rem)

    cost = pl.CostEstimate(
        flops=B * D1 * C * D3,                       # streaming adds
        transcendentals=0,
        bytes_accessed=B * D1 * C * D3 * itemsize
        + num_s * num_b * b_blk * C * 4,
    )

    pooled_sums = pl.pallas_call(
        kernel,
        out_shape=jax.ShapeDtypeStruct((num_s, num_b, b_blk, C), jnp.float32),
        grid_spec=pltpu.PrefetchScalarGridSpec(
            num_scalar_prefetch=0,
            grid=(num_s, num_b, num_d1),
            in_specs=[
                pl.BlockSpec((b_blk, d1_blk, C, D3), x_index_map),
            ],
            out_specs=pl.BlockSpec((None, None, b_blk, C),
                                   lambda si, bi, di: (si, bi, 0, 0)),
            scratch_shapes=[pltpu.VMEM((b_blk, C, D3), jnp.float32)],
        ),
        compiler_params=pltpu.CompilerParams(
            dimension_semantics=("parallel", "parallel", "arbitrary"),
            vmem_limit_bytes=vmem_limit,
        ),
        cost_estimate=cost,
    )(x)

    # Combine D1-split partials, drop batch-padding rows, convert raw sums to
    # the mean over original dims (1, 3).
    pooled = pooled_sums.sum(axis=0).reshape(num_b * b_blk, C)[:B]
    pooled = pooled / jnp.float32(D1 * D3)

    # Tiny channel-attention MLP (O(B*C) work): run in plain XLA, not in-kernel.
    h = jnp.maximum(jnp.tanh(pooled @ w1 + b1), 0.0)
    out = h @ w2 + b2                                 # (B, C)
    return jnp.mean(out, axis=0)                      # (C,)


def _reference(x, w1, b1, w2, b2):
    pooled = jnp.swapaxes(x, 2, 1).mean(axis=-1).mean(axis=-1)   # (B, C)
    h = jnp.maximum(jnp.tanh(pooled @ w1 + b1), 0.0)
    out = h @ w2 + b2
    return jnp.mean(out, axis=0)


if __name__ == "__main__":
    B, D1, CHA, D3 = 2, 48, 16, 64

    key = jax.random.PRNGKey(0)
    kx, k1, k2, k3, k4 = jax.random.split(key, 5)

    x = jax.random.normal(kx, (B, D1, CHA, D3), dtype=jnp.float32)

    # PyTorch-style uniform +-1/sqrt(fan_in), stored pre-transposed (y = x @ W + b).
    bound1 = 1.0 / jnp.sqrt(jnp.float32(CHA))
    w1 = jax.random.uniform(k1, (CHA, 4), jnp.float32, -bound1, bound1)
    b1 = jax.random.uniform(k2, (4,), jnp.float32, -bound1, bound1)
    bound2 = 1.0 / jnp.sqrt(jnp.float32(4))
    w2 = jax.random.uniform(k3, (4, CHA), jnp.float32, -bound2, bound2)
    b2 = jax.random.uniform(k4, (CHA,), jnp.float32, -bound2, bound2)

    out = jax.block_until_ready(my_channel_attention(x, w1, b1, w2, b2))

    ref = _reference(x, w1, b1, w2, b2)
    assert out.shape == (CHA,)
    assert jnp.allclose(out, ref, atol=2e-5, rtol=1e-5), (out, ref)

    print("KERNEL_OK")
</pallas_src>

<mosaic_0001>
module attributes {stable_mosaic.version = 11 : i64} {
  func.func @_pooled_sum_kernel(%arg0: i32, %arg1: i32, %arg2: i32, %arg3: memref<2x24x16x64xf32, #tpu.memory_space<vmem>>, %arg4: memref<1x1x2x16xf32, #tpu.memory_space<vmem>>, %arg5: memref<2x16x64xf32, #tpu.memory_space<vmem>>) attributes {dimension_semantics = [#tpu.dimension_semantics<parallel>, #tpu.dimension_semantics<parallel>, #tpu.dimension_semantics<arbitrary>], iteration_bounds = array<i64: 2, 1, 1>, scalar_prefetch = 0 : i64, scratch_operands = 1 : i64, tpu.core_type = #tpu.core_type<tc>, window_params = [{transform_indices = @transform_0, window_bounds = array<i64: 2, 24, 16, 64>}, {transform_indices = @transform_1, window_bounds = array<i64: 1, 1, 2, 16>}]} {
    %c0_i32 = arith.constant 0 : i32
    %0 = arith.cmpi eq, %arg2, %c0_i32 : i32
    %1 = arith.extui %0 : i1 to i32
    %c0_i32_0 = arith.constant 0 : i32
    %2 = arith.cmpi ne, %1, %c0_i32_0 : i32
    scf.if %2 {
      %cst = arith.constant 0.000000e+00 : f32
      %11 = vector.broadcast %cst : f32 to vector<2x16x64xf32>
      %c0 = arith.constant 0 : index
      %c0_4 = arith.constant 0 : index
      %c0_5 = arith.constant 0 : index
      %12 = vector.load %arg5[%c0, %c0_4, %c0_5] : memref<2x16x64xf32, #tpu.memory_space<vmem>>, vector<2x16x64xf32>
      tpu.vector_store %arg5[%c0, %c0_4, %c0_5], %11 {strides = array<i32>} : memref<2x16x64xf32, #tpu.memory_space<vmem>>, vector<2x16x64xf32>,
    } else {
    }
    %c1_i32 = arith.constant 1 : i32
    %3 = arith.muli %arg0, %c1_i32 : i32
    %4 = arith.addi %3, %arg2 : i32
    %c2_i32 = arith.constant 2 : i32
    %5 = arith.cmpi slt, %4, %c2_i32 : i32
    %6 = arith.extui %5 : i1 to i32
    %c0_i32_1 = arith.constant 0 : i32
    %7 = arith.cmpi ne, %6, %c0_i32_1 : i32
    scf.if %7 {
      %c0 = arith.constant 0 : index
      %c0_4 = arith.constant 0 : index
      %c0_5 = arith.constant 0 : index
      %11 = vector.load %arg5[%c0, %c0_4, %c0_5] : memref<2x16x64xf32, #tpu.memory_space<vmem>>, vector<2x16x64xf32>
      %c0_6 = arith.constant 0 : index
      %c0_7 = arith.constant 0 : index
      %c0_8 = arith.constant 0 : index
      %c0_9 = arith.constant 0 : index
      %12 = vector.load %arg3[%c0_6, %c0_7, %c0_8, %c0_9] : memref<2x24x16x64xf32, #tpu.memory_space<vmem>>, vector<2x24x16x64xf32>
      %cst = arith.constant dense<0.000000e+00> : vector<2x16x64xf32>
      %13 = vector.multi_reduction <add>, %12, %cst [1] : vector<2x24x16x64xf32> to vector<2x16x64xf32>
      %14 = arith.addf %11, %13 : vector<2x16x64xf32>
      %c0_10 = arith.constant 0 : index
      %c0_11 = arith.constant 0 : index
      %c0_12 = arith.constant 0 : index
      %15 = vector.load %arg5[%c0_10, %c0_11, %c0_12] : memref<2x16x64xf32, #tpu.memory_space<vmem>>, vector<2x16x64xf32>
      tpu.vector_store %arg5[%c0_10, %c0_11, %c0_12], %14 {strides = array<i32>} : memref<2x16x64xf32, #tpu.memory_space<vmem>>, vector<2x16x64xf32>,
    } else {
    }
    %c0_i32_2 = arith.constant 0 : i32
    %8 = arith.cmpi eq, %arg2, %c0_i32_2 : i32
    %9 = arith.extui %8 : i1 to i32
    %c0_i32_3 = arith.constant 0 : i32
    %10 = arith.cmpi ne, %9, %c0_i32_3 : i32
    scf.if %10 {
      %c0 = arith.constant 0 : index
      %c0_4 = arith.constant 0 : index
      %c0_5 = arith.constant 0 : index
      %11 = vector.load %arg5[%c0, %c0_4, %c0_5] : memref<2x16x64xf32, #tpu.memory_space<vmem>>, vector<2x16x64xf32>
      %cst = arith.constant dense<0.000000e+00> : vector<2x16xf32>
      %12 = vector.multi_reduction <add>, %11, %cst [2] : vector<2x16x64xf32> to vector<2x16xf32>
      %c0_6 = arith.constant 0 : index
      %c0_7 = arith.constant 0 : index
      %c0_8 = arith.constant 0 : index
      %c0_9 = arith.constant 0 : index
      %13 = vector.load %arg4[%c0_6, %c0_7, %c0_8, %c0_9] : memref<1x1x2x16xf32, #tpu.memory_space<vmem>>, vector<1x1x2x16xf32>
      %14 = vector.shape_cast %13 : vector<1x1x2x16xf32> to vector<2x16xf32>
      %15 = vector.shape_cast %12 : vector<2x16xf32> to vector<1x1x2x16xf32>
      tpu.vector_store %arg4[%c0_6, %c0_7, %c0_8, %c0_9], %15 {strides = array<i32>} : memref<1x1x2x16xf32, #tpu.memory_space<vmem>>, vector<1x1x2x16xf32>,
    } else {
    }
    return
  }
  func.func @transform_0(%arg0: i32, %arg1: i32, %arg2: i32) -> (i32, i32, i32, i32) {
    %c1_i32 = arith.constant 1 : i32
    %0 = arith.muli %arg0, %c1_i32 : i32
    %1 = arith.addi %0, %arg2 : i32
    %c0_i32 = arith.constant 0 : i32
    %c0_i32_0 = arith.constant 0 : i32
    %c0_i32_1 = arith.constant 0 : i32
    return %arg1, %1, %c0_i32, %c0_i32_0 : i32, i32, i32, i32
  }
  func.func @transform_1(%arg0: i32, %arg1: i32, %arg2: i32) -> (i32, i32, i32, i32) {
    %c0_i32 = arith.constant 0 : i32
    %c0_i32_0 = arith.constant 0 : i32
    %c0_i32_1 = arith.constant 0 : i32
    return %arg0, %arg1, %c0_i32, %c0_i32_0 : i32, i32, i32, i32
  }
}

</mosaic_0001>

<llo_original>
// kernel: tpu_custom_call.1
$region0: #{tpu_custom_call.1}
  #allocation0 [shape = 'u32[]', space=smem, size = 0x4, offset = 0x4, fixed_abs, tag = 'smem constant byte address 0x4 - core index']
  #allocation1 [shape = 'u32[144,128]{1,0:T(1,128)}', space=vmem, size = 0x12000, scoped, tag = 'internal scratch']
  #allocation2 [shape = 'f32[2,16,64]{2,1,0:T(8,128)}', space=vmem, size = 0x4000, scoped, tag = 'scratch operand']
  #allocation7 [shape = 's32[]', space=sflag, size = 0x4, offset = 0, fixed_abs, tag = 'sflag constant byte address 0x0 - dummy sync flag']
  %s0 = inlined_call_operand.hbm [shape: f32[2,48,16,64], index: 0, kind: input, shape index: {}]
  %s1 = inlined_call_operand.hbm [shape: f32[2,1,2,16], index: 1, kind: output, shape index: {}]
  %s2 = sld [smem:[#allocation0]]
  $region53: #{tpu_custom_call.1} parent=0
    _
  %s4 = ssub.s32 1, %s2
  %s5 = scalar_select 0, %s4, %s2
  $region1: #{tpu_custom_call.1} parent=0
    #allocation3 [shape = 'u8[786432]{0}', space=vmem, size = 0xc0000, scoped, tag = 'input window, operand 0']
    #allocation4 [shape = 's32[2]{0}', space=sflag, size = 0x8, scoped, tag = 'scoped memory for tpu_custom_call.1']
    #allocation5 [shape = 's32[2]{0}', space=sflag, size = 0x8, scoped, tag = 'scoped memory for tpu_custom_call.1']
    #allocation6 [shape = 'u8[2048]{0}', space=vmem, size = 0x800, scoped, tag = 'output window, operand 0']
    %6 = vsyncpa [#allocation4], 0
    %s7 = scalar_lea.sflag [#allocation4], 1
    %8 = vsyncpa %s7, 0
    %9 = vsyncpa [#allocation5], 0
    %s10 = scalar_lea.sflag [#allocation5], 1
    %11 = vsyncpa %s10, 0
    loop: start=0, step=1, limit=4
    $region2: #{tpu_custom_call.1} parent=1 // loop_pre_header
      _
    $region3: #{tpu_custom_call.1} parent=1 // loop_header
      %s13 = sphi 0, %s17
      %p14 = scmp.ge.s32.totalorder %s13, 4
      %s20 = sphi 0, %s39
      %s21 = sphi 0, %s35
      %s22 = sphi 0, %s31
      %s23 = sphi 0, %s20
      %s24 = sphi 0, %s21
      %s25 = sphi 0, %s22
      %s26 = sphi 0, %s23
      %s27 = sphi 0, %s24
      %s28 = sphi 0, %s25
      %s46 = sphi 0, %s48
      %s49 = sphi 0, %s46
      %s50 = sphi 0, %s49
      %s66 = sphi 0, %s50
      %s74 = sphi 0, %s76
      %s77 = sphi 0, %s74
      %s78 = sphi 0, %s77
      %s94 = sphi 0, %s78
    $region4: #{tpu_custom_call.1} parent=1 // loop_header_branch
      %16 = sbr.rel (%p14) target = $region8
    $region5: #{tpu_custom_call.1} parent=1 // loop_body
      %s18 = ssub.s32 %s13, 1
      %s19 = ssub.s32 %s13, 2
      %s29 = sadd.s32 1, %s22
      %p30 = scmp.ge.s32.totalorder %s29, 1
      %s31 = scalar_select %p30, 0, %s29
      %s32 = sadd.s32 1, %s21
      %s33 = scalar_select %p30, %s32, %s21
      %p34 = scmp.ge.s32.totalorder %s33, 1
      %s35 = scalar_select %p34, 0, %s33
      %s36 = sadd.s32 1, %s20
      %s37 = scalar_select %p34, %s36, %s20
      %p38 = scmp.ge.s32.totalorder %s37, 2
      %s39 = scalar_select %p38, 0, %s37
      %s40 = sadd.s32 %s20, %s22
      %s41 = sadd.s32 %s39, %s31
      %s42 = ssub.s32 %s21, %s35
      %s43 = ssub.s32 %s40, %s41
      %s44 = sor.u32 %s42, %s43
      %p45 = scmp.eq.s32.totalorder %s44, 0
      %s47 = sadd.s32 %s46, 1
      %s48 = scalar_select %p45, %s46, %s47
      %p51 = pneg %p45
      %p52 = scmp.eq.s32.totalorder %s13, 1
      %p53 = por %p51, %p52
      %p54 = scmp.ne.s32.totalorder %s46, %s49
      %p55 = scmp.eq.s32.totalorder %s13, 0
      %p56 = por %p54, %p55
      %p57 = scmp.ne.s32.totalorder %s46, %s49
      %p58 = scmp.eq.s32.totalorder %s18, 1
      %p59 = por %p57, %p58
      %p60 = scmp.ne.s32.totalorder %s49, %s50
      %p61 = scmp.eq.s32.totalorder %s18, 0
      %p62 = por %p60, %p61
      %p63 = scmp.ne.s32.totalorder %s49, %s50
      %p64 = scmp.eq.s32.totalorder %s19, 1
      %p65 = por %p63, %p64
      %p67 = scmp.ne.s32.totalorder %s50, %s66
      %p68 = scmp.eq.s32.totalorder %s19, 0
      %p69 = por %p67, %p68
      %s70 = ssub.s32 %s20, %s39
      %s71 = ssub.s32 %s21, %s35
      %s72 = sor.u32 %s70, %s71
      %p73 = scmp.eq.s32.totalorder %s72, 0
      %s75 = sadd.s32 %s74, 1
      %s76 = scalar_select %p73, %s74, %s75
      %p79 = pneg %p73
      %p80 = scmp.eq.s32.totalorder %s13, 1
      %p81 = por %p79, %p80
      %p82 = scmp.ne.s32.totalorder %s74, %s77
      %p83 = scmp.eq.s32.totalorder %s13, 0
      %p84 = por %p82, %p83
      %p85 = scmp.ne.s32.totalorder %s74, %s77
      %p86 = scmp.eq.s32.totalorder %s18, 1
      %p87 = por %p85, %p86
      %p88 = scmp.ne.s32.totalorder %s77, %s78
      %p89 = scmp.eq.s32.totalorder %s18, 0
      %p90 = por %p88, %p89
      %p91 = scmp.ne.s32.totalorder %s77, %s78
      %p92 = scmp.eq.s32.totalorder %s19, 1
      %p93 = por %p91, %p92
      %p95 = scmp.ne.s32.totalorder %s78, %s94
      %p96 = scmp.eq.s32.totalorder %s19, 0
      %p97 = por %p95, %p96
      %p98 = scmp.le.s32.totalorder 1, %s13
      %p99 = scmp.lt.s32.totalorder %s13, 3
      %p100 = pnand %p98, %p99
      %p101 = pneg %p100
      // Predicated region
      $region9: #{tpu_custom_call.1} parent=5 // pred_check
        _
      $region10: #{tpu_custom_call.1} parent=5 // pred_check_branch
        %103 = sbr.rel (%p100) target = $region12
      $region11: #{tpu_custom_call.1} parent=5 // pred_region
        %s104 = ssub.s32 %s13, 1
      $region12: #{tpu_custom_call.1} parent=5 // pred_fallthru
        _
      %p105 = scmp.lt.s32.totalorder %s13, 2
      // Predicated region
      $region13: #{tpu_custom_call.1} parent=5 // pred_check
        %p106 = pneg %p105
      $region14: #{tpu_custom_call.1} parent=5 // pred_check_branch
        %108 = sbr.rel (%p106) target = $region16
      $region15: #{tpu_custom_call.1} parent=5 // pred_region
        // Predicated region
        $region17: #{tpu_custom_call.1} parent=15 // pred_check
          %p109 = pneg %p56
        $region18: #{tpu_custom_call.1} parent=15 // pred_check_branch
          %111 = sbr.rel (%p109) target = $region20
        $region19: #{tpu_custom_call.1} parent=15 // pred_region
          #allocation8 [shape = 'u32[6]{0}', space=smem, size = 0x18, scoped, tag = 'DMA stride descriptor']
          %s112 = sand.u32 %s46, 1
          %s113 = scalar_lea.sflag [#allocation4], %s112
          %s114 = sand.u32 %s46, 1
          %s115 = smul.addr %s114, 768
          %s116 = scalar_lea.vmem [#allocation3], %s115
          %s117 = sadd.s32 %s20, %s22
          %s118 = smul.u32 2, %s21
          %s119 = smul.u32 24, %s117
          %s121 = ssub.s32 12288, 12288
          %122 = vsyncadd %s113, %s121
          %s123 = smul.addr %s119, 2
          %s124 = smul.addr %s118, 96
          %s125 = sadd.s32 %s123, %s124
          %s126 = smul.addr %s125, 128
          %s127 = scalar_lea.hbm %s0, %s126
          %s129 = sshll.u32 1, 14
          %s130 = sxor.u32 4294967295, %s129
          %s132 = sld [smem:[#allocation0]]
          %s133 = sadd.s32 2, %s132
          %s135 = sshll.u32 7, 26
          %s136 = sxor.u32 4294967295, %s135
          %s137 = sand.u32 0, %s136
          %s138 = sshll.u32 %s133, 26
          %s139 = sor.u32 %s137, %s138
          %s140 = sshll.u32 %s116, 4
          %s141 = int_to_ptr.vmem [resolvable:$true] %s140
          %147 = sst [smem:[#allocation8]] 12288
          %s148 = scalar_lea.smem [#allocation8], 1
          %149 = sst [smem:[%s148]] 6144
          %s150 = scalar_lea.smem [#allocation8], 2
          %151 = sst [smem:[%s150]] 48
          %s152 = scalar_lea.smem [#allocation8], 3
          %153 = sst [smem:[%s152]] 128
          %s154 = scalar_lea.smem [#allocation8], 4
          %155 = sst [smem:[%s154]] 128
          %s156 = scalar_lea.smem [#allocation8], 5
          %157 = sst [smem:[%s156]] 8
          %159 = dma.general %s127, 12288, %s141, %s113, [#allocation7], [#allocation8], %s139, 0
        $region20: #{tpu_custom_call.1} parent=15 // pred_fallthru
          _
      $region16: #{tpu_custom_call.1} parent=5 // pred_fallthru
        _
      %p160 = scmp.le.s32.totalorder 1, %s13
      %p161 = scmp.lt.s32.totalorder %s13, 3
      %p162 = pnand %p160, %p161
      %p163 = pneg %p162
      // Predicated region
      $region21: #{tpu_custom_call.1} parent=5 // pred_check
        _
      $region22: #{tpu_custom_call.1} parent=5 // pred_check_branch
        %165 = sbr.rel (%p162) target = $region24
      $region23: #{tpu_custom_call.1} parent=5 // pred_region
        %s166 = ssub.s32 %s13, 1
        %s167 = sand.u32 %s49, 1
        %s168 = scalar_lea.sflag [#allocation4], %s167
        %s169 = sand.u32 %s49, 1
        %s170 = smul.addr %s169, 768
        %s171 = scalar_lea.vmem [#allocation3], %s170
        // Predicated region
        $region25: #{tpu_custom_call.1} parent=23 // pred_check
          %p172 = pneg %p62
        $region26: #{tpu_custom_call.1} parent=23 // pred_check_branch
          %174 = sbr.rel (%p172) target = $region28
        $region27: #{tpu_custom_call.1} parent=23 // pred_region
          %175 = dma.done %s168, 12288
        $region28: #{tpu_custom_call.1} parent=23 // pred_fallthru
          _
        %s176 = sand.u32 %s49, 1
        %s177 = scalar_lea.sflag [#allocation4], %s176
        %s178 = sand.u32 %s49, 1
        %s179 = smul.addr %s178, 768
        %s180 = scalar_lea.vmem [#allocation3], %s179
        %p181 = pneg %p62
        %p182 = pneg %p59
        %p183 = pneg %p90
        %p184 = pneg %p87
        %s185 = sand.u32 %s77, 1
        %s186 = scalar_lea.sflag [#allocation5], %s185
        %s187 = sand.u32 %s77, 1
        %s188 = smul.addr %s187, 2
        %s189 = scalar_lea.vmem [#allocation6], %s188
        %s190 = sadd.s32 %s23, %s25
        %s191 = smul.u32 2, %s24
        %s192 = smul.u32 24, %s190
        %p193 = scmp.eq.s32.totalorder %s25, 0
        // Predicated region
        $region29: #{tpu_custom_call.1} parent=23 // pred_check
          %p194 = pneg %p193
        $region30: #{tpu_custom_call.1} parent=23 // pred_check_branch
          %196 = sbr.rel (%p194) target = $region32
        $region31: #{tpu_custom_call.1} parent=23 // pred_region
          %vm197 = vcmask 523264
          %198 = vst.msk [vmem:[#allocation2] sm:$0xff] %vm197, 0.0
          %199 = vst.msk [vmem:[#allocation2 + $0x8] sm:$0xff] %vm197, 0.0
          %200 = vst.msk [vmem:[#allocation2 + $0x10] sm:$0xff] %vm197, 0.0
          %201 = vst.msk [vmem:[#allocation2 + $0x18] sm:$0xff] %vm197, 0.0
        $region32: #{tpu_custom_call.1} parent=23 // pred_fallthru
          _
        %s202 = sadd.s32 %s23, %s25
        %p203 = scmp.lt.s32.totalorder %s202, 2
        // Predicated region
        $region33: #{tpu_custom_call.1} parent=23 // pred_check
          %p204 = pneg %p203
        $region34: #{tpu_custom_call.1} parent=23 // pred_check_branch
          %206 = sbr.rel (%p204) target = $region36
        $region35: #{tpu_custom_call.1} parent=23 // pred_region
          %v207 = vld [vmem:[#allocation2] sm:$0xff]
          %v208 = vld [vmem:[#allocation2 + $0x8] sm:$0xff]
          %v209 = vld [vmem:[#allocation2 + $0x10] sm:$0xff]
          %v210 = vld [vmem:[#allocation2 + $0x18] sm:$0xff]
          %v211 = vld [vmem:[%s171] sm:$0xff]
          %v212 = vld [vmem:[%s171 + $0x8] sm:$0xff]
          %v213 = vld [vmem:[%s171 + $0x10] sm:$0xff]
          %v214 = vld [vmem:[%s171 + $0x18] sm:$0xff]
          %v215 = vld [vmem:[%s171 + $0x20] sm:$0xff]
          %v216 = vld [vmem:[%s171 + $0x28] sm:$0xff]
          %v217 = vld [vmem:[%s171 + $0x30] sm:$0xff]
          %v218 = vld [vmem:[%s171 + $0x38] sm:$0xff]
          %v219 = vld [vmem:[%s171 + $0x40] sm:$0xff]
          %v220 = vld [vmem:[%s171 + $0x48] sm:$0xff]
          %v221 = vld [vmem:[%s171 + $0x50] sm:$0xff]
          %v222 = vld [vmem:[%s171 + $0x58] sm:$0xff]
          %v223 = vld [vmem:[%s171 + $0x60] sm:$0xff]
          %v224 = vld [vmem:[%s171 + $0x68] sm:$0xff]
          %v225 = vld [vmem:[%s171 + $0x70] sm:$0xff]
          %v226 = vld [vmem:[%s171 + $0x78] sm:$0xff]
          %v227 = vld [vmem:[%s171 + $0x80] sm:$0xff]
          %v228 = vld [vmem:[%s171 + $0x88] sm:$0xff]
          %v229 = vld [vmem:[%s171 + $0x90] sm:$0xff]
          %v230 = vld [vmem:[%s171 + $0x98] sm:$0xff]
          %v231 = vld [vmem:[%s171 + $0xa0] sm:$0xff]
          %v232 = vld [vmem:[%s171 + $0xa8] sm:$0xff]
          %v233 = vld [vmem:[%s171 + $0xb0] sm:$0xff]
          %v234 = vld [vmem:[%s171 + $0xb8] sm:$0xff]
          %v235 = vld [vmem:[%s171 + $0xc0] sm:$0xff]
          %v236 = vld [vmem:[%s171 + $0xc8] sm:$0xff]
          %v237 = vld [vmem:[%s171 + $0xd0] sm:$0xff]
          %v238 = vld [vmem:[%s171 + $0xd8] sm:$0xff]
          %v239 = vld [vmem:[%s171 + $0xe0] sm:$0xff]
          %v240 = vld [vmem:[%s171 + $0xe8] sm:$0xff]
          %v241 = vld [vmem:[%s171 + $0xf0] sm:$0xff]
          %v242 = vld [vmem:[%s171 + $0xf8] sm:$0xff]
          %v243 = vld [vmem:[%s171 + $0x100] sm:$0xff]
          %v244 = vld [vmem:[%s171 + $0x108] sm:$0xff]
          %v245 = vld [vmem:[%s171 + $0x110] sm:$0xff]
          %v246 = vld [vmem:[%s171 + $0x118] sm:$0xff]
          %v247 = vld [vmem:[%s171 + $0x120] sm:$0xff]
          %v248 = vld [vmem:[%s171 + $0x128] sm:$0xff]
          %v249 = vld [vmem:[%s171 + $0x130] sm:$0xff]
          %v250 = vld [vmem:[%s171 + $0x138] sm:$0xff]
          %v251 = vld [vmem:[%s171 + $0x140] sm:$0xff]
          %v252 = vld [vmem:[%s171 + $0x148] sm:$0xff]
          %v253 = vld [vmem:[%s171 + $0x150] sm:$0xff]
          %v254 = vld [vmem:[%s171 + $0x158] sm:$0xff]
          %v255 = vld [vmem:[%s171 + $0x160] sm:$0xff]
          %v256 = vld [vmem:[%s171 + $0x168] sm:$0xff]
          %v257 = vld [vmem:[%s171 + $0x170] sm:$0xff]
          %v258 = vld [vmem:[%s171 + $0x178] sm:$0xff]
          %v259 = vld [vmem:[%s171 + $0x180] sm:$0xff]
          %v260 = vld [vmem:[%s171 + $0x188] sm:$0xff]
          %v261 = vld [vmem:[%s171 + $0x190] sm:$0xff]
          %v262 = vld [vmem:[%s171 + $0x198] sm:$0xff]
          %v263 = vld [vmem:[%s171 + $0x1a0] sm:$0xff]
          %v264 = vld [vmem:[%s171 + $0x1a8] sm:$0xff]
          %v265 = vld [vmem:[%s171 + $0x1b0] sm:$0xff]
          %v266 = vld [vmem:[%s171 + $0x1b8] sm:$0xff]
          %v267 = vld [vmem:[%s171 + $0x1c0] sm:$0xff]
          %v268 = vld [vmem:[%s171 + $0x1c8] sm:$0xff]
          %v269 = vld [vmem:[%s171 + $0x1d0] sm:$0xff]
          %v270 = vld [vmem:[%s171 + $0x1d8] sm:$0xff]
          %v271 = vld [vmem:[%s171 + $0x1e0] sm:$0xff]
          %v272 = vld [vmem:[%s171 + $0x1e8] sm:$0xff]
          %v273 = vld [vmem:[%s171 + $0x1f0] sm:$0xff]
          %v274 = vld [vmem:[%s171 + $0x1f8] sm:$0xff]
          %v275 = vld [vmem:[%s171 + $0x200] sm:$0xff]
          %v276 = vld [vmem:[%s171 + $0x208] sm:$0xff]
          %v277 = vld [vmem:[%s171 + $0x210] sm:$0xff]
          %v278 = vld [vmem:[%s171 + $0x218] sm:$0xff]
          %v279 = vld [vmem:[%s171 + $0x220] sm:$0xff]
          %v280 = vld [vmem:[%s171 + $0x228] sm:$0xff]
          %v281 = vld [vmem:[%s171 + $0x230] sm:$0xff]
          %v282 = vld [vmem:[%s171 + $0x238] sm:$0xff]
          %v283 = vld [vmem:[%s171 + $0x240] sm:$0xff]
          %v284 = vld [vmem:[%s171 + $0x248] sm:$0xff]
          %v285 = vld [vmem:[%s171 + $0x250] sm:$0xff]
          %v286 = vld [vmem:[%s171 + $0x258] sm:$0xff]
          %v287 = vld [vmem:[%s171 + $0x260] sm:$0xff]
          %v288 = vld [vmem:[%s171 + $0x268] sm:$0xff]
          %v289 = vld [vmem:[%s171 + $0x270] sm:$0xff]
          %v290 = vld [vmem:[%s171 + $0x278] sm:$0xff]
          %v291 = vld [vmem:[%s171 + $0x280] sm:$0xff]
          %v292 = vld [vmem:[%s171 + $0x288] sm:$0xff]
          %v293 = vld [vmem:[%s171 + $0x290] sm:$0xff]
          %v294 = vld [vmem:[%s171 + $0x298] sm:$0xff]
          %v295 = vld [vmem:[%s171 + $0x2a0] sm:$0xff]
          %v296 = vld [vmem:[%s171 + $0x2a8] sm:$0xff]
          %v297 = vld [vmem:[%s171 + $0x2b0] sm:$0xff]
          %v298 = vld [vmem:[%s171 + $0x2b8] sm:$0xff]
          %v299 = vld [vmem:[%s171 + $0x2c0] sm:$0xff]
          %v300 = vld [vmem:[%s171 + $0x2c8] sm:$0xff]
          %v301 = vld [vmem:[%s171 + $0x2d0] sm:$0xff]
          %v302 = vld [vmem:[%s171 + $0x2d8] sm:$0xff]
          %v303 = vld [vmem:[%s171 + $0x2e0] sm:$0xff]
          %v304 = vld [vmem:[%s171 + $0x2e8] sm:$0xff]
          %v305 = vld [vmem:[%s171 + $0x2f0] sm:$0xff]
          %v306 = vld [vmem:[%s171 + $0x2f8] sm:$0xff]
          %vm307 = vcmask 523264
          %v308 = vsel %vm307, %v211, 0.0
          %v309 = vsel %vm307, %v213, 0.0
          %v310 = vadd.f32 %v308, %v309
          %v311 = vsel %vm307, %v215, 0.0
          %v312 = vadd.f32 %v310, %v311
          %v313 = vsel %vm307, %v217, 0.0
          %v314 = vadd.f32 %v312, %v313
          %v315 = vsel %vm307, %v219, 0.0
          %v316 = vadd.f32 %v314, %v315
          %v317 = vsel %vm307, %v221, 0.0
          %v318 = vadd.f32 %v316, %v317
          %v319 = vsel %vm307, %v223, 0.0
          %v320 = vadd.f32 %v318, %v319
          %v321 = vsel %vm307, %v225, 0.0
          %v322 = vadd.f32 %v320, %v321
          %v323 = vsel %vm307, %v227, 0.0
          %v324 = vadd.f32 %v322, %v323
          %v325 = vsel %vm307, %v229, 0.0
          %v326 = vadd.f32 %v324, %v325
          %v327 = vsel %vm307, %v231, 0.0
          %v328 = vadd.f32 %v326, %v327
          %v329 = vsel %vm307, %v233, 0.0
          %v330 = vadd.f32 %v328, %v329
          %v331 = vsel %vm307, %v235, 0.0
          %v332 = vadd.f32 %v330, %v331
          %v333 = vsel %vm307, %v237, 0.0
          %v334 = vadd.f32 %v332, %v333
          %v335 = vsel %vm307, %v239, 0.0
          %v336 = vadd.f32 %v334, %v335
          %v337 = vsel %vm307, %v241, 0.0
          %v338 = vadd.f32 %v336, %v337
          %v339 = vsel %vm307, %v243, 0.0
          %v340 = vadd.f32 %v338, %v339
          %v341 = vsel %vm307, %v245, 0.0
          %v342 = vadd.f32 %v340, %v341
          %v343 = vsel %vm307, %v247, 0.0
          %v344 = vadd.f32 %v342, %v343
          %v345 = vsel %vm307, %v249, 0.0
          %v346 = vadd.f32 %v344, %v345
          %v347 = vsel %vm307, %v251, 0.0
          %v348 = vadd.f32 %v346, %v347
          %v349 = vsel %vm307, %v253, 0.0
          %v350 = vadd.f32 %v348, %v349
          %v351 = vsel %vm307, %v255, 0.0
          %v352 = vadd.f32 %v350, %v351
          %v353 = vsel %vm307, %v257, 0.0
          %v354 = vadd.f32 %v352, %v353
          %v355 = vsel %vm307, %v212, 0.0
          %v356 = vsel %vm307, %v214, 0.0
          %v357 = vadd.f32 %v355, %v356
          %v358 = vsel %vm307, %v216, 0.0
          %v359 = vadd.f32 %v357, %v358
          %v360 = vsel %vm307, %v218, 0.0
          %v361 = vadd.f32 %v359, %v360
          %v362 = vsel %vm307, %v220, 0.0
          %v363 = vadd.f32 %v361, %v362
          %v364 = vsel %vm307, %v222, 0.0
          %v365 = vadd.f32 %v363, %v364
          %v366 = vsel %vm307, %v224, 0.0
          %v367 = vadd.f32 %v365, %v366
          %v368 = vsel %vm307, %v226, 0.0
          %v369 = vadd.f32 %v367, %v368
          %v370 = vsel %vm307, %v228, 0.0
          %v371 = vadd.f32 %v369, %v370
          %v372 = vsel %vm307, %v230, 0.0
          %v373 = vadd.f32 %v371, %v372
          %v374 = vsel %vm307, %v232, 0.0
          %v375 = vadd.f32 %v373, %v374
          %v376 = vsel %vm307, %v234, 0.0
          %v377 = vadd.f32 %v375, %v376
          %v378 = vsel %vm307, %v236, 0.0
          %v379 = vadd.f32 %v377, %v378
          %v380 = vsel %vm307, %v238, 0.0
          %v381 = vadd.f32 %v379, %v380
          %v382 = vsel %vm307, %v240, 0.0
          %v383 = vadd.f32 %v381, %v382
          %v384 = vsel %vm307, %v242, 0.0
          %v385 = vadd.f32 %v383, %v384
          %v386 = vsel %vm307, %v244, 0.0
          %v387 = vadd.f32 %v385, %v386
          %v388 = vsel %vm307, %v246, 0.0
          %v389 = vadd.f32 %v387, %v388
          %v390 = vsel %vm307, %v248, 0.0
          %v391 = vadd.f32 %v389, %v390
          %v392 = vsel %vm307, %v250, 0.0
          %v393 = vadd.f32 %v391, %v392
          %v394 = vsel %vm307, %v252, 0.0
          %v395 = vadd.f32 %v393, %v394
          %v396 = vsel %vm307, %v254, 0.0
          %v397 = vadd.f32 %v395, %v396
          %v398 = vsel %vm307, %v256, 0.0
          %v399 = vadd.f32 %v397, %v398
          %v400 = vsel %vm307, %v258, 0.0
          %v401 = vadd.f32 %v399, %v400
          %v402 = vsel %vm307, %v259, 0.0
          %v403 = vsel %vm307, %v261, 0.0
          %v404 = vadd.f32 %v402, %v403
          %v405 = vsel %vm307, %v263, 0.0
          %v406 = vadd.f32 %v404, %v405
          %v407 = vsel %vm307, %v265, 0.0
          %v408 = vadd.f32 %v406, %v407
          %v409 = vsel %vm307, %v267, 0.0
          %v410 = vadd.f32 %v408, %v409
          %v411 = vsel %vm307, %v269, 0.0
          %v412 = vadd.f32 %v410, %v411
          %v413 = vsel %vm307, %v271, 0.0
          %v414 = vadd.f32 %v412, %v413
          %v415 = vsel %vm307, %v273, 0.0
          %v416 = vadd.f32 %v414, %v415
          %v417 = vsel %vm307, %v275, 0.0
          %v418 = vadd.f32 %v416, %v417
          %v419 = vsel %vm307, %v277, 0.0
          %v420 = vadd.f32 %v418, %v419
          %v421 = vsel %vm307, %v279, 0.0
          %v422 = vadd.f32 %v420, %v421
          %v423 = vsel %vm307, %v281, 0.0
          %v424 = vadd.f32 %v422, %v423
          %v425 = vsel %vm307, %v283, 0.0
          %v426 = vadd.f32 %v424, %v425
          %v427 = vsel %vm307, %v285, 0.0
          %v428 = vadd.f32 %v426, %v427
          %v429 = vsel %vm307, %v287, 0.0
          %v430 = vadd.f32 %v428, %v429
          %v431 = vsel %vm307, %v289, 0.0
          %v432 = vadd.f32 %v430, %v431
          %v433 = vsel %vm307, %v291, 0.0
          %v434 = vadd.f32 %v432, %v433
          %v435 = vsel %vm307, %v293, 0.0
          %v436 = vadd.f32 %v434, %v435
          %v437 = vsel %vm307, %v295, 0.0
          %v438 = vadd.f32 %v436, %v437
          %v439 = vsel %vm307, %v297, 0.0
          %v440 = vadd.f32 %v438, %v439
          %v441 = vsel %vm307, %v299, 0.0
          %v442 = vadd.f32 %v440, %v441
          %v443 = vsel %vm307, %v301, 0.0
          %v444 = vadd.f32 %v442, %v443
          %v445 = vsel %vm307, %v303, 0.0
          %v446 = vadd.f32 %v444, %v445
          %v447 = vsel %vm307, %v305, 0.0
          %v448 = vadd.f32 %v446, %v447
          %v449 = vsel %vm307, %v260, 0.0
          %v450 = vsel %vm307, %v262, 0.0
          %v451 = vadd.f32 %v449, %v450
          %v452 = vsel %vm307, %v264, 0.0
          %v453 = vadd.f32 %v451, %v452
          %v454 = vsel %vm307, %v266, 0.0
          %v455 = vadd.f32 %v453, %v454
          %v456 = vsel %vm307, %v268, 0.0
          %v457 = vadd.f32 %v455, %v456
          %v458 = vsel %vm307, %v270, 0.0
          %v459 = vadd.f32 %v457, %v458
          %v460 = vsel %vm307, %v272, 0.0
          %v461 = vadd.f32 %v459, %v460
          %v462 = vsel %vm307, %v274, 0.0
          %v463 = vadd.f32 %v461, %v462
          %v464 = vsel %vm307, %v276, 0.0
          %v465 = vadd.f32 %v463, %v464
          %v466 = vsel %vm307, %v278, 0.0
          %v467 = vadd.f32 %v465, %v466
          %v468 = vsel %vm307, %v280, 0.0
          %v469 = vadd.f32 %v467, %v468
          %v470 = vsel %vm307, %v282, 0.0
          %v471 = vadd.f32 %v469, %v470
          %v472 = vsel %vm307, %v284, 0.0
          %v473 = vadd.f32 %v471, %v472
          %v474 = vsel %vm307, %v286, 0.0
          %v475 = vadd.f32 %v473, %v474
          %v476 = vsel %vm307, %v288, 0.0
          %v477 = vadd.f32 %v475, %v476
          %v478 = vsel %vm307, %v290, 0.0
          %v479 = vadd.f32 %v477, %v478
          %v480 = vsel %vm307, %v292, 0.0
          %v481 = vadd.f32 %v479, %v480
          %v482 = vsel %vm307, %v294, 0.0
          %v483 = vadd.f32 %v481, %v482
          %v484 = vsel %vm307, %v296, 0.0
          %v485 = vadd.f32 %v483, %v484
          %v486 = vsel %vm307, %v298, 0.0
          %v487 = vadd.f32 %v485, %v486
          %v488 = vsel %vm307, %v300, 0.0
          %v489 = vadd.f32 %v487, %v488
          %v490 = vsel %vm307, %v302, 0.0
          %v491 = vadd.f32 %v489, %v490
          %v492 = vsel %vm307, %v304, 0.0
          %v493 = vadd.f32 %v491, %v492
          %v494 = vsel %vm307, %v306, 0.0
          %v495 = vadd.f32 %v493, %v494
          %v496 = vadd.f32 %v207, %v354
          %v497 = vadd.f32 %v208, %v401
          %v498 = vadd.f32 %v209, %v448
          %v499 = vadd.f32 %v210, %v495
          %500 = vst.msk [vmem:[#allocation2] sm:$0xff] %vm307, %v496
          %501 = vst.msk [vmem:[#allocation2 + $0x8] sm:$0xff] %vm307, %v497
          %502 = vst.msk [vmem:[#allocation2 + $0x10] sm:$0xff] %vm307, %v498
          %503 = vst.msk [vmem:[#allocation2 + $0x18] sm:$0xff] %vm307, %v499
        $region36: #{tpu_custom_call.1} parent=23 // pred_fallthru
          _
        // Predicated region
        $region37: #{tpu_custom_call.1} parent=23 // pred_check
          %p504 = pneg %p193
        $region38: #{tpu_custom_call.1} parent=23 // pred_check_branch
          %506 = sbr.rel (%p504) target = $region40
        $region39: #{tpu_custom_call.1} parent=23 // pred_region
          %v507 = vld [vmem:[#allocation2] sm:$0xff]
          %v508 = vld [vmem:[#allocation2 + $0x8] sm:$0xff]
          %v509 = vld [vmem:[#allocation2 + $0x10] sm:$0xff]
          %v510 = vld [vmem:[#allocation2 + $0x18] sm:$0xff]
          %vm511 = vcmask 523264
          %v512 = vsel %vm511, %v507, 0.0
          %513 = vadd.xlane.f32.xlu0 %v512
          %v514 = vpop.xlane.xlu0 %513
          %v515 = vsel %vm511, %v508, 0.0
          %516 = vadd.xlane.f32.xlu0 %v515
          %v517 = vpop.xlane.xlu0 %516
          %v518 = vsel %vm511, %v509, 0.0
          %519 = vadd.xlane.f32.xlu0 %v518
          %v520 = vpop.xlane.xlu0 %519
          %v521 = vsel %vm511, %v510, 0.0
          %522 = vadd.xlane.f32.xlu0 %v521
          %v523 = vpop.xlane.xlu0 %522
          %v528 = vlaneseq
          %v529 = vand.u32 %v528, 127
          %v530 = vlaneseq
          %v531 = vshrl.u32 %v530, 7
          %v532 = vsub.s32 %v529, %v531
          %v533 = vrot.slane %v514, %v532
          %v534 = vadd.s32 %v529, 4294967288
          %v535 = vlaneseq
          %v536 = vshrl.u32 %v535, 7
          %v537 = vsub.s32 %v534, %v536
          %v538 = vrot.slane %v517, %v537
          %vm539 = vcmask 130112
          %v540 = vsel %vm539, %v538, %v533
          %v541 = vlaneseq
          %v542 = vshrl.u32 %v541, 7
          %v543 = vsub.s32 %v529, %v542
          %v544 = vrot.slane %v520, %v543
          %v545 = vlaneseq
          %v546 = vshrl.u32 %v545, 7
          %v547 = vsub.s32 %v534, %v546
          %v548 = vrot.slane %v523, %v547
          %v549 = vsel %vm539, %v548, %v544
          %vm550 = vcmask 1041409
          %v551 = vsel %vm550, %v549, %v540
          %vm553 = vcmask 123904
          %554 = vst.msk [vmem:[%s189] sm:$0x3] %vm553, %v551
        $region40: #{tpu_custom_call.1} parent=23 // pred_fallthru
          _
        %s555 = sand.u32 %s77, 1
        %s556 = scalar_lea.sflag [#allocation5], %s555
        %s557 = sand.u32 %s77, 1
        %s558 = smul.addr %s557, 2
        %s559 = scalar_lea.vmem [#allocation6], %s558
        // Predicated region
        $region41: #{tpu_custom_call.1} parent=23 // pred_check
          %p560 = pneg %p87
        $region42: #{tpu_custom_call.1} parent=23 // pred_check_branch
          %562 = sbr.rel (%p560) target = $region44
        $region43: #{tpu_custom_call.1} parent=23 // pred_region
          %s564 = ssub.s32 32, 32
          %565 = vsyncadd %s556, %s564
          %s566 = sadd.s32 %s24, %s23
          %s567 = smul.addr %s566, 32
          %s568 = scalar_lea.hbm %s1, %s567
          %s570 = sshll.u32 %s559, 4
          %s571 = int_to_ptr.vmem [resolvable:$true] %s570
          %573 = dma.vmem_to_hbm [thread:$0]  %s571, 32, %s568, %s556
        $region44: #{tpu_custom_call.1} parent=23 // pred_fallthru
          _
      $region24: #{tpu_custom_call.1} parent=5 // pred_fallthru
        _
      %p574 = scmp.le.s32.totalorder 2, %s13
      // Predicated region
      $region45: #{tpu_custom_call.1} parent=5 // pred_check
        %p575 = pneg %p574
      $region46: #{tpu_custom_call.1} parent=5 // pred_check_branch
        %577 = sbr.rel (%p575) target = $region48
      $region47: #{tpu_custom_call.1} parent=5 // pred_region
        %s578 = ssub.s32 %s13, 2
        // Predicated region
        $region49: #{tpu_custom_call.1} parent=47 // pred_check
          %p579 = pneg %p93
        $region50: #{tpu_custom_call.1} parent=47 // pred_check_branch
          %581 = sbr.rel (%p579) target = $region52
        $region51: #{tpu_custom_call.1} parent=47 // pred_region
          %s582 = sand.u32 %s78, 1
          %s583 = scalar_lea.sflag [#allocation5], %s582
          %s584 = sand.u32 %s78, 1
          %s585 = smul.addr %s584, 2
          %s586 = scalar_lea.vmem [#allocation6], %s585
          %587 = dma.done %s583, 32
        $region52: #{tpu_custom_call.1} parent=47 // pred_fallthru
          _
      $region48: #{tpu_custom_call.1} parent=5 // pred_fallthru
        _
    $region6: #{tpu_custom_call.1} parent=1 // loop_footer
      %s17 = sadd.s32 1, %s13
    $region7: #{tpu_custom_call.1} parent=1 // loop_footer_branch
      %12 = sbr.rel target = $region3
    $region8: #{tpu_custom_call.1} parent=1 // loop_exit
      _
    %588 = vsyncpa [#allocation4], 1
    %s589 = scalar_lea.sflag [#allocation4], 1
    %590 = vsyncpa %s589, 1
    %591 = vsyncpa [#allocation5], 1
    %s592 = scalar_lea.sflag [#allocation5], 1
    %593 = vsyncpa %s592, 1

</llo_original>
